<compile_context>
chip_gen: v7x
topology: tpu7x:2x2x1
jax: 0.10.0
libtpu: 0.0.40
codegen_flags: <defaults>
</compile_context>

<pallas_src>
import functools

import numpy as np
import jax
import jax.numpy as jnp
from jax.experimental import pallas as pl
from jax.experimental.pallas import tpu as pltpu


_LANES = 128
_MAX_BLOCK_ROWS = 2048   # 2048 * 128 * 4 B = 1 MiB per input block


def _round_up(x, m):
    return (x + m - 1) // m * m


def _flatten_pad_2d(x):
    """Flatten to f32 [rows_padded, 128] (zero padded).

    Returns (array2d, block_rows, num_blocks)."""
    flat = x.reshape(-1).astype(jnp.float32)
    n = flat.shape[0]
    rows = -(-n // _LANES)                                  # ceil
    block_rows = min(_MAX_BLOCK_ROWS, _round_up(rows, 8))   # >= 8 sublanes
    rows_padded = _round_up(rows, block_rows)
    pad = rows_padded * _LANES - n
    if pad:
        flat = jnp.pad(flat, (0, pad))
    return flat.reshape(rows_padded, _LANES), block_rows, rows_padded // block_rows


def _joint_ceeq_kernel(dec_ref, true_ref, eq_ref, tx_ref,
                       total_ref, ldec_ref, leq_ref,
                       *, t_dec, t_eq, inv_n_dec, inv_n_eq, alpha, beta):
    i = pl.program_id(0)

    @pl.when(i == 0)
    def _init():
        total_ref[...] = jnp.zeros_like(total_ref)
        ldec_ref[...] = jnp.zeros_like(ldec_ref)
        leq_ref[...] = jnp.zeros_like(leq_ref)

    @pl.when(i < t_dec)
    def _acc_dec():
        d = dec_ref[...] - true_ref[...]
        ldec_ref[...] += jnp.sum(d * d)

    @pl.when(i < t_eq)
    def _acc_eq():
        d = eq_ref[...] - tx_ref[...]
        leq_ref[...] += jnp.sum(d * d)

    @pl.when(i == pl.num_programs(0) - 1)
    def _finalize():
        loss_dec = ldec_ref[...] * inv_n_dec
        loss_eq = leq_ref[...] * inv_n_eq
        ldec_ref[...] = loss_dec
        leq_ref[...] = loss_eq
        total_ref[...] = alpha * loss_dec + beta * loss_eq


def joint_ceeq_loss(csi_dec, csi_true, equalized_signal, tx_signal,
                    alpha=0.2, beta=0.8):
    """Returns (total_loss, loss_dec, loss_equalized) as f32 scalars."""
    assert csi_dec.shape == csi_true.shape
    assert equalized_signal.shape == tx_signal.shape
    assert csi_dec.shape[-1] == 2 and equalized_signal.shape[-1] == 2

    dec2d, br_d, t_d = _flatten_pad_2d(csi_dec)
    true2d, _, _ = _flatten_pad_2d(csi_true)
    eq2d, br_e, t_e = _flatten_pad_2d(equalized_signal)
    tx2d, _, _ = _flatten_pad_2d(tx_signal)

    grid_n = max(t_d, t_e)

    def make_idx_map(t):
        if t == grid_n:
            return lambda i: (i, 0)
        last = t - 1
        # Clamp: block index stops changing, so Pallas issues no extra DMA;
        # the corresponding accumulation is gated with pl.when in the kernel.
        return lambda i: (jnp.minimum(i, last), 0)

    # The reference mean is over complex elements = prod(shape[:-1]).
    n_dec = int(np.prod(csi_dec.shape[:-1]))
    n_eq = int(np.prod(equalized_signal.shape[:-1]))

    scalar_spec = pl.BlockSpec((1, 1), lambda i: (0, 0))

    total, loss_dec, loss_eq = pl.pallas_call(
        functools.partial(
            _joint_ceeq_kernel,
            t_dec=t_d, t_eq=t_e,
            inv_n_dec=1.0 / n_dec, inv_n_eq=1.0 / n_eq,
            alpha=float(alpha), beta=float(beta)),
        grid=(grid_n,),
        in_specs=[
            pl.BlockSpec((br_d, _LANES), make_idx_map(t_d)),
            pl.BlockSpec((br_d, _LANES), make_idx_map(t_d)),
            pl.BlockSpec((br_e, _LANES), make_idx_map(t_e)),
            pl.BlockSpec((br_e, _LANES), make_idx_map(t_e)),
        ],
        out_specs=(scalar_spec, scalar_spec, scalar_spec),
        out_shape=(jax.ShapeDtypeStruct((1, 1), jnp.float32),) * 3,
        compiler_params=pltpu.CompilerParams(
            dimension_semantics=("arbitrary",)),   # grid axis is a reduction
    )(dec2d, true2d, eq2d, tx2d)

    return total[0, 0], loss_dec[0, 0], loss_eq[0, 0]


def _ref_complex_mse(est, lab):
    d = est - lab
    return jnp.mean(jnp.square(jnp.sqrt(jnp.square(d[..., 0]) + jnp.square(d[..., 1]))))


if __name__ == "__main__":
    # Small shapes consistent with the module: CSI [B, n_subc, n_sym, n_tx, n_rx, 2]
    # and signals [B, n_symbols, 2].
    key = jax.random.PRNGKey(0)
    k1, k2, k3, k4 = jax.random.split(key, 4)
    csi_dec = jax.random.normal(k1, (2, 4, 2, 2, 2, 2), jnp.float32)
    csi_true = jax.random.normal(k2, (2, 4, 2, 2, 2, 2), jnp.float32)
    equalized_signal = jax.random.normal(k3, (2, 64, 2), jnp.float32)
    tx_signal = jax.random.normal(k4, (2, 64, 2), jnp.float32)

    fn = jax.jit(functools.partial(joint_ceeq_loss, alpha=0.2, beta=0.8))
    total, loss_dec, loss_eq = fn(csi_dec, csi_true, equalized_signal, tx_signal)
    jax.block_until_ready((total, loss_dec, loss_eq))

    # pure-JAX reference check
    ref_dec = _ref_complex_mse(csi_dec, csi_true)
    ref_eq = _ref_complex_mse(equalized_signal, tx_signal)
    ref_total = 0.2 * ref_dec + 0.8 * ref_eq
    assert jnp.allclose(loss_dec, ref_dec, rtol=1e-5, atol=1e-6)
    assert jnp.allclose(loss_eq, ref_eq, rtol=1e-5, atol=1e-6)
    assert jnp.allclose(total, ref_total, rtol=1e-5, atol=1e-6)
    assert all(bool(jnp.isfinite(v)) for v in (total, loss_dec, loss_eq))
    print("KERNEL_OK")
</pallas_src>

<mosaic_0001>
module attributes {stable_mosaic.version = 11 : i64} {
  func.func @_joint_ceeq_kernel(%arg0: i32, %arg1: memref<8x128xf32, #tpu.memory_space<vmem>>, %arg2: memref<8x128xf32, #tpu.memory_space<vmem>>, %arg3: memref<8x128xf32, #tpu.memory_space<vmem>>, %arg4: memref<8x128xf32, #tpu.memory_space<vmem>>, %arg5: memref<1x1xf32, #tpu.memory_space<vmem>>, %arg6: memref<1x1xf32, #tpu.memory_space<vmem>>, %arg7: memref<1x1xf32, #tpu.memory_space<vmem>>) attributes {dimension_semantics = [#tpu.dimension_semantics<arbitrary>], iteration_bounds = array<i64: 1>, scalar_prefetch = 0 : i64, scratch_operands = 0 : i64, tpu.core_type = #tpu.core_type<tc>, window_params = [{transform_indices = @transform_0, window_bounds = array<i64: 8, 128>}, {transform_indices = @transform_1, window_bounds = array<i64: 8, 128>}, {transform_indices = @transform_2, window_bounds = array<i64: 8, 128>}, {transform_indices = @transform_3, window_bounds = array<i64: 8, 128>}, {pipeline_mode = #tpu.pipeline_mode<synchronous>, transform_indices = @transform_4, window_bounds = array<i64: 1, 1>}, {pipeline_mode = #tpu.pipeline_mode<synchronous>, transform_indices = @transform_5, window_bounds = array<i64: 1, 1>}, {pipeline_mode = #tpu.pipeline_mode<synchronous>, transform_indices = @transform_6, window_bounds = array<i64: 1, 1>}]} {
    %c0_i32 = arith.constant 0 : i32
    %0 = arith.cmpi eq, %arg0, %c0_i32 : i32
    %1 = arith.extui %0 : i1 to i32
    %c0_i32_0 = arith.constant 0 : i32
    %2 = arith.cmpi ne, %1, %c0_i32_0 : i32
    scf.if %2 {
      %cst = arith.constant 0.000000e+00 : f32
      %12 = vector.broadcast %cst : f32 to vector<1x1xf32>
      %c0 = arith.constant 0 : index
      %c0_6 = arith.constant 0 : index
      %13 = vector.load %arg5[%c0, %c0_6] : memref<1x1xf32, #tpu.memory_space<vmem>>, vector<1x1xf32>
      tpu.vector_store %arg5[%c0, %c0_6], %12 {strides = array<i32>} : memref<1x1xf32, #tpu.memory_space<vmem>>, vector<1x1xf32>,
      %cst_7 = arith.constant 0.000000e+00 : f32
      %14 = vector.broadcast %cst_7 : f32 to vector<1x1xf32>
      %c0_8 = arith.constant 0 : index
      %c0_9 = arith.constant 0 : index
      %15 = vector.load %arg6[%c0_8, %c0_9] : memref<1x1xf32, #tpu.memory_space<vmem>>, vector<1x1xf32>
      tpu.vector_store %arg6[%c0_8, %c0_9], %14 {strides = array<i32>} : memref<1x1xf32, #tpu.memory_space<vmem>>, vector<1x1xf32>,
      %cst_10 = arith.constant 0.000000e+00 : f32
      %16 = vector.broadcast %cst_10 : f32 to vector<1x1xf32>
      %c0_11 = arith.constant 0 : index
      %c0_12 = arith.constant 0 : index
      %17 = vector.load %arg7[%c0_11, %c0_12] : memref<1x1xf32, #tpu.memory_space<vmem>>, vector<1x1xf32>
      tpu.vector_store %arg7[%c0_11, %c0_12], %16 {strides = array<i32>} : memref<1x1xf32, #tpu.memory_space<vmem>>, vector<1x1xf32>,
    } else {
    }
    %c1_i32 = arith.constant 1 : i32
    %3 = arith.cmpi slt, %arg0, %c1_i32 : i32
    %4 = arith.extui %3 : i1 to i32
    %c0_i32_1 = arith.constant 0 : i32
    %5 = arith.cmpi ne, %4, %c0_i32_1 : i32
    scf.if %5 {
      %c0 = arith.constant 0 : index
      %c0_6 = arith.constant 0 : index
      %12 = vector.load %arg1[%c0, %c0_6] : memref<8x128xf32, #tpu.memory_space<vmem>>, vector<8x128xf32>
      %c0_7 = arith.constant 0 : index
      %c0_8 = arith.constant 0 : index
      %13 = vector.load %arg2[%c0_7, %c0_8] : memref<8x128xf32, #tpu.memory_space<vmem>>, vector<8x128xf32>
      %14 = arith.subf %12, %13 : vector<8x128xf32>
      %c0_9 = arith.constant 0 : index
      %c0_10 = arith.constant 0 : index
      %15 = vector.load %arg6[%c0_9, %c0_10] : memref<1x1xf32, #tpu.memory_space<vmem>>, vector<1x1xf32>
      %16 = arith.mulf %14, %14 : vector<8x128xf32>
      %17 = vector.shape_cast %16 : vector<8x128xf32> to vector<1x8x128xf32>
      %cst = arith.constant dense<0.000000e+00> : vector<1xf32>
      %18 = vector.multi_reduction <add>, %17, %cst [1, 2] : vector<1x8x128xf32> to vector<1xf32>
      %19 = vector.shape_cast %18 : vector<1xf32> to vector<1x1x1xf32>
      %20 = vector.extract %19[0, 0, 0] : f32 from vector<1x1x1xf32>
      %21 = vector.broadcast %20 : f32 to vector<1x1xf32>
      %22 = arith.addf %15, %21 : vector<1x1xf32>
      %c0_11 = arith.constant 0 : index
      %c0_12 = arith.constant 0 : index
      %23 = vector.load %arg6[%c0_11, %c0_12] : memref<1x1xf32, #tpu.memory_space<vmem>>, vector<1x1xf32>
      tpu.vector_store %arg6[%c0_11, %c0_12], %22 {strides = array<i32>} : memref<1x1xf32, #tpu.memory_space<vmem>>, vector<1x1xf32>,
    } else {
    }
    %c1_i32_2 = arith.constant 1 : i32
    %6 = arith.cmpi slt, %arg0, %c1_i32_2 : i32
    %7 = arith.extui %6 : i1 to i32
    %c0_i32_3 = arith.constant 0 : i32
    %8 = arith.cmpi ne, %7, %c0_i32_3 : i32
    scf.if %8 {
      %c0 = arith.constant 0 : index
      %c0_6 = arith.constant 0 : index
      %12 = vector.load %arg3[%c0, %c0_6] : memref<8x128xf32, #tpu.memory_space<vmem>>, vector<8x128xf32>
      %c0_7 = arith.constant 0 : index
      %c0_8 = arith.constant 0 : index
      %13 = vector.load %arg4[%c0_7, %c0_8] : memref<8x128xf32, #tpu.memory_space<vmem>>, vector<8x128xf32>
      %14 = arith.subf %12, %13 : vector<8x128xf32>
      %c0_9 = arith.constant 0 : index
      %c0_10 = arith.constant 0 : index
      %15 = vector.load %arg7[%c0_9, %c0_10] : memref<1x1xf32, #tpu.memory_space<vmem>>, vector<1x1xf32>
      %16 = arith.mulf %14, %14 : vector<8x128xf32>
      %17 = vector.shape_cast %16 : vector<8x128xf32> to vector<1x8x128xf32>
      %cst = arith.constant dense<0.000000e+00> : vector<1xf32>
      %18 = vector.multi_reduction <add>, %17, %cst [1, 2] : vector<1x8x128xf32> to vector<1xf32>
      %19 = vector.shape_cast %18 : vector<1xf32> to vector<1x1x1xf32>
      %20 = vector.extract %19[0, 0, 0] : f32 from vector<1x1x1xf32>
      %21 = vector.broadcast %20 : f32 to vector<1x1xf32>
      %22 = arith.addf %15, %21 : vector<1x1xf32>
      %c0_11 = arith.constant 0 : index
      %c0_12 = arith.constant 0 : index
      %23 = vector.load %arg7[%c0_11, %c0_12] : memref<1x1xf32, #tpu.memory_space<vmem>>, vector<1x1xf32>
      tpu.vector_store %arg7[%c0_11, %c0_12], %22 {strides = array<i32>} : memref<1x1xf32, #tpu.memory_space<vmem>>, vector<1x1xf32>,
    } else {
    }
    %c0_i32_4 = arith.constant 0 : i32
    %9 = arith.cmpi eq, %arg0, %c0_i32_4 : i32
    %10 = arith.extui %9 : i1 to i32
    %c0_i32_5 = arith.constant 0 : i32
    %11 = arith.cmpi ne, %10, %c0_i32_5 : i32
    scf.if %11 {
      %c0 = arith.constant 0 : index
      %c0_6 = arith.constant 0 : index
      %12 = vector.load %arg6[%c0, %c0_6] : memref<1x1xf32, #tpu.memory_space<vmem>>, vector<1x1xf32>
      %cst = arith.constant 1.562500e-02 : f32
      %13 = vector.broadcast %cst : f32 to vector<1x1xf32>
      %14 = arith.mulf %12, %13 : vector<1x1xf32>
      %c0_7 = arith.constant 0 : index
      %c0_8 = arith.constant 0 : index
      %15 = vector.load %arg7[%c0_7, %c0_8] : memref<1x1xf32, #tpu.memory_space<vmem>>, vector<1x1xf32>
      %cst_9 = arith.constant 7.812500e-03 : f32
      %16 = vector.broadcast %cst_9 : f32 to vector<1x1xf32>
      %17 = arith.mulf %15, %16 : vector<1x1xf32>
      %c0_10 = arith.constant 0 : index
      %c0_11 = arith.constant 0 : index
      %18 = vector.load %arg6[%c0_10, %c0_11] : memref<1x1xf32, #tpu.memory_space<vmem>>, vector<1x1xf32>
      tpu.vector_store %arg6[%c0_10, %c0_11], %14 {strides = array<i32>} : memref<1x1xf32, #tpu.memory_space<vmem>>, vector<1x1xf32>,
      %c0_12 = arith.constant 0 : index
      %c0_13 = arith.constant 0 : index
      %19 = vector.load %arg7[%c0_12, %c0_13] : memref<1x1xf32, #tpu.memory_space<vmem>>, vector<1x1xf32>
      tpu.vector_store %arg7[%c0_12, %c0_13], %17 {strides = array<i32>} : memref<1x1xf32, #tpu.memory_space<vmem>>, vector<1x1xf32>,
      %cst_14 = arith.constant 2.000000e-01 : f32
      %20 = vector.broadcast %cst_14 : f32 to vector<1x1xf32>
      %21 = arith.mulf %20, %14 : vector<1x1xf32>
      %cst_15 = arith.constant 8.000000e-01 : f32
      %22 = vector.broadcast %cst_15 : f32 to vector<1x1xf32>
      %23 = arith.mulf %22, %17 : vector<1x1xf32>
      %24 = arith.addf %21, %23 : vector<1x1xf32>
      %c0_16 = arith.constant 0 : index
      %c0_17 = arith.constant 0 : index
      %25 = vector.load %arg5[%c0_16, %c0_17] : memref<1x1xf32, #tpu.memory_space<vmem>>, vector<1x1xf32>
      tpu.vector_store %arg5[%c0_16, %c0_17], %24 {strides = array<i32>} : memref<1x1xf32, #tpu.memory_space<vmem>>, vector<1x1xf32>,
    } else {
    }
    return
  }
  func.func @transform_0(%arg0: i32) -> (i32, i32) {
    %c0_i32 = arith.constant 0 : i32
    %c0_i32_0 = arith.constant 0 : i32
    return %arg0, %c0_i32 : i32, i32
  }
  func.func @transform_1(%arg0: i32) -> (i32, i32) {
    %c0_i32 = arith.constant 0 : i32
    %c0_i32_0 = arith.constant 0 : i32
    return %arg0, %c0_i32 : i32, i32
  }
  func.func @transform_2(%arg0: i32) -> (i32, i32) {
    %c0_i32 = arith.constant 0 : i32
    %c0_i32_0 = arith.constant 0 : i32
    return %arg0, %c0_i32 : i32, i32
  }
  func.func @transform_3(%arg0: i32) -> (i32, i32) {
    %c0_i32 = arith.constant 0 : i32
    %c0_i32_0 = arith.constant 0 : i32
    return %arg0, %c0_i32 : i32, i32
  }
  func.func @transform_4(%arg0: i32) -> (i32, i32) {
    %c0_i32 = arith.constant 0 : i32
    %c0_i32_0 = arith.constant 0 : i32
    %c0_i32_1 = arith.constant 0 : i32
    return %c0_i32, %c0_i32_0 : i32, i32
  }
  func.func @transform_5(%arg0: i32) -> (i32, i32) {
    %c0_i32 = arith.constant 0 : i32
    %c0_i32_0 = arith.constant 0 : i32
    %c0_i32_1 = arith.constant 0 : i32
    return %c0_i32, %c0_i32_0 : i32, i32
  }
  func.func @transform_6(%arg0: i32) -> (i32, i32) {
    %c0_i32 = arith.constant 0 : i32
    %c0_i32_0 = arith.constant 0 : i32
    %c0_i32_1 = arith.constant 0 : i32
    return %c0_i32, %c0_i32_0 : i32, i32
  }
}

</mosaic_0001>

<llo_original>
// kernel: joint_ceeq_loss.1
$region0: #{joint_ceeq_loss.1}
  #allocation0 [shape = 'u32[]', space=smem, size = 0x4, offset = 0x4, fixed_abs, tag = 'smem constant byte address 0x4 - core index']
  #allocation1 [shape = 'u32[144,128]{1,0:T(1,128)}', space=vmem, size = 0x12000, scoped, tag = 'internal scratch']
  %s0 = inlined_call_operand.vmem [shape: f32[8,128], index: 0, kind: input, shape index: {}]
  %s1 = inlined_call_operand.vmem [shape: f32[8,128], index: 1, kind: input, shape index: {}]
  %s2 = inlined_call_operand.vmem [shape: f32[8,128], index: 2, kind: input, shape index: {}]
  %s3 = inlined_call_operand.vmem [shape: f32[8,128], index: 3, kind: input, shape index: {}]
  %s4 = inlined_call_operand.hbm [shape: f32[1,1], index: 4, kind: output, shape index: {0}]
  %s5 = inlined_call_operand.hbm [shape: f32[1,1], index: 5, kind: output, shape index: {1}]
  %s6 = inlined_call_operand.hbm [shape: f32[1,1], index: 6, kind: output, shape index: {2}]
  %7 = xla_tuple %s4, %s5, %s6
  %s8 = sld [smem:[#allocation0]]
  $region54: #{joint_ceeq_loss.1} parent=0
    _
  %s10 = ssub.s32 1, %s8
  %s11 = scalar_select 0, %s10, %s8
  $region1: #{joint_ceeq_loss.1} parent=0
    #allocation2 [shape = 'u8[512]{0}', space=vmem, size = 0x400, scoped, tag = 'output window, operand 0, single buffered']
    #allocation3 [shape = 's32[1]{0}', space=sflag, size = 0x4, scoped, tag = 'scoped memory for joint_ceeq_loss.1']
    #allocation4 [shape = 'u8[512]{0}', space=vmem, size = 0x400, scoped, tag = 'output window, operand 1, single buffered']
    #allocation5 [shape = 's32[1]{0}', space=sflag, size = 0x4, scoped, tag = 'scoped memory for joint_ceeq_loss.1']
    #allocation6 [shape = 'u8[512]{0}', space=vmem, size = 0x400, scoped, tag = 'output window, operand 2, single buffered']
    %12 = vsyncpa [#allocation3], 0
    %13 = vsyncpa [#allocation5], 0
    // Predicated region
    $region2: #{joint_ceeq_loss.1} parent=1 // pred_check
      _
    $region3: #{joint_ceeq_loss.1} parent=1 // pred_check_branch
      %15 = sbr.rel (0) target = $region5
    $region4: #{joint_ceeq_loss.1} parent=1 // pred_region
      _
    $region5: #{joint_ceeq_loss.1} parent=1 // pred_fallthru
      _
    // Predicated region
    $region6: #{joint_ceeq_loss.1} parent=1 // pred_check
      _
    $region7: #{joint_ceeq_loss.1} parent=1 // pred_check_branch
      %17 = sbr.rel (0) target = $region9
    $region8: #{joint_ceeq_loss.1} parent=1 // pred_region
      _
    $region9: #{joint_ceeq_loss.1} parent=1 // pred_fallthru
      _
    // Predicated region
    $region10: #{joint_ceeq_loss.1} parent=1 // pred_check
      _
    $region11: #{joint_ceeq_loss.1} parent=1 // pred_check_branch
      %19 = sbr.rel (0) target = $region13
    $region12: #{joint_ceeq_loss.1} parent=1 // pred_region
      _
    $region13: #{joint_ceeq_loss.1} parent=1 // pred_fallthru
      _
    // Predicated region
    $region14: #{joint_ceeq_loss.1} parent=1 // pred_check
      _
    $region15: #{joint_ceeq_loss.1} parent=1 // pred_check_branch
      %21 = sbr.rel (0) target = $region17
    $region16: #{joint_ceeq_loss.1} parent=1 // pred_region
      _
    $region17: #{joint_ceeq_loss.1} parent=1 // pred_fallthru
      _
    %p22 = scmp.eq.s32.totalorder 0, 0
    // Predicated region
    $region18: #{joint_ceeq_loss.1} parent=1 // pred_check
      %p23 = pneg %p22
    $region19: #{joint_ceeq_loss.1} parent=1 // pred_check_branch
      %25 = sbr.rel (%p23) target = $region21
    $region20: #{joint_ceeq_loss.1} parent=1 // pred_region
      %vm26 = vcmask 0
      %27 = vst.msk [vmem:[#allocation2] sm:$0x1] %vm26, 0.0
      %28 = vst.msk [vmem:[#allocation4] sm:$0x1] %vm26, 0.0
      %29 = vst.msk [vmem:[#allocation6] sm:$0x1] %vm26, 0.0
    $region21: #{joint_ceeq_loss.1} parent=1 // pred_fallthru
      _
    %p30 = scmp.lt.s32.totalorder 0, 1
    // Predicated region
    $region22: #{joint_ceeq_loss.1} parent=1 // pred_check
      %p31 = pneg %p30
    $region23: #{joint_ceeq_loss.1} parent=1 // pred_check_branch
      %33 = sbr.rel (%p31) target = $region25
    $region24: #{joint_ceeq_loss.1} parent=1 // pred_region
      %v34 = vld [vmem:[%s0] sm:$0xff]
      %v35 = vld [vmem:[%s1] sm:$0xff]
      %v36 = vsub.f32 %v34, %v35
      %v37 = vld [vmem:[#allocation4] sm:$0x1]
      %v38 = vmul.f32 %v36, %v36
      %39 = vadd.xlane.f32.xlu0 %v38
      %v40 = vpop.xlane.xlu0 %39
      %v41 = vrot.slane %v40, 4
      %v42 = vadd.f32 %v40, %v41
      %v43 = vrot.slane %v42, 2
      %v44 = vadd.f32 %v42, %v43
      %v45 = vrot.slane %v44, 1
      %v46 = vadd.f32 %v44, %v45
      %s47 = vtos %v46
      %v48 = vstv %s47
      %v49 = vadd.f32 %v37, %v48
      %vm50 = vcmask 0
      %51 = vst.msk [vmem:[#allocation4] sm:$0x1] %vm50, %v49
      %v52 = vld [vmem:[%s2] sm:$0xff]
      %v53 = vld [vmem:[%s3] sm:$0xff]
      %v54 = vsub.f32 %v52, %v53
      %v55 = vld [vmem:[#allocation6] sm:$0x1]
      %v56 = vmul.f32 %v54, %v54
      %57 = vadd.xlane.f32.xlu0 %v56
      %v58 = vpop.xlane.xlu0 %57
      %v59 = vrot.slane %v58, 4
      %v60 = vadd.f32 %v58, %v59
      %v61 = vrot.slane %v60, 2
      %v62 = vadd.f32 %v60, %v61
      %v63 = vrot.slane %v62, 1
      %v64 = vadd.f32 %v62, %v63
      %s65 = vtos %v64
      %v66 = vstv %s65
      %v67 = vadd.f32 %v55, %v66
      %68 = vst.msk [vmem:[#allocation6] sm:$0x1] %vm50, %v67
    $region25: #{joint_ceeq_loss.1} parent=1 // pred_fallthru
      _
    // Predicated region
    $region26: #{joint_ceeq_loss.1} parent=1 // pred_check
      %p69 = pneg %p22
    $region27: #{joint_ceeq_loss.1} parent=1 // pred_check_branch
      %71 = sbr.rel (%p69) target = $region29
    $region28: #{joint_ceeq_loss.1} parent=1 // pred_region
      %v72 = vld [vmem:[#allocation4] sm:$0x1]
      %v73 = vmul.f32 %v72, 0.015625
      %v74 = vld [vmem:[#allocation6] sm:$0x1]
      %v75 = vmul.f32 %v74, 0.0078125
      %vm76 = vcmask 0
      %77 = vst.msk [vmem:[#allocation4] sm:$0x1] %vm76, %v73
      %78 = vst.msk [vmem:[#allocation6] sm:$0x1] %vm76, %v75
      %v79 = vmul.f32 %v73, 0.2
      %v80 = vmul.f32 %v75, 0.8
      %v81 = vadd.f32 %v79, %v80
      %82 = vst.msk [vmem:[#allocation2] sm:$0x1] %vm76, %v81
    $region29: #{joint_ceeq_loss.1} parent=1 // pred_fallthru
      _
    // Predicated region
    $region30: #{joint_ceeq_loss.1} parent=1 // pred_check
      _
    $region31: #{joint_ceeq_loss.1} parent=1 // pred_check_branch
      %84 = sbr.rel (0) target = $region33
    $region32: #{joint_ceeq_loss.1} parent=1 // pred_region
      %s86 = ssub.s32 16, 16
      %87 = vsyncadd [#allocation3], %s86
      %s89 = sshll.u32 [#allocation2], 4
      %s90 = int_to_ptr.vmem [resolvable:$true] %s89
      %92 = dma.vmem_to_hbm [thread:$0]  %s90, 16, %s4, [#allocation3]
    $region33: #{joint_ceeq_loss.1} parent=1 // pred_fallthru
      _
    // Predicated region
    $region34: #{joint_ceeq_loss.1} parent=1 // pred_check
      _
    $region35: #{joint_ceeq_loss.1} parent=1 // pred_check_branch
      %94 = sbr.rel (0) target = $region37
    $region36: #{joint_ceeq_loss.1} parent=1 // pred_region
      %s96 = ssub.s32 16, 16
      %97 = vsyncadd [#allocation5], %s96
      %s99 = sshll.u32 [#allocation4], 4
      %s100 = int_to_ptr.vmem [resolvable:$true] %s99
      %102 = dma.vmem_to_hbm [thread:$0]  %s100, 16, %s5, [#allocation5]
    $region37: #{joint_ceeq_loss.1} parent=1 // pred_fallthru
      _
    // Predicated region
    $region38: #{joint_ceeq_loss.1} parent=1 // pred_check
      _
    $region39: #{joint_ceeq_loss.1} parent=1 // pred_check_branch
      %104 = sbr.rel (0) target = $region41
    $region40: #{joint_ceeq_loss.1} parent=1 // pred_region
      %s106 = ssub.s32 16, 16
      %107 = vsyncadd [#allocation5], %s106
      %s109 = sshll.u32 [#allocation6], 4
      %s110 = int_to_ptr.vmem [resolvable:$true] %s109
      %112 = dma.vmem_to_hbm [thread:$0]  %s110, 16, %s6, [#allocation5]
    $region41: #{joint_ceeq_loss.1} parent=1 // pred_fallthru
      _
    // Predicated region
    $region42: #{joint_ceeq_loss.1} parent=1 // pred_check
      _
    $region43: #{joint_ceeq_loss.1} parent=1 // pred_check_branch
      %114 = sbr.rel (0) target = $region45
    $region44: #{joint_ceeq_loss.1} parent=1 // pred_region
      %115 = dma.done [#allocation3], 16
    $region45: #{joint_ceeq_loss.1} parent=1 // pred_fallthru
      _
    // Predicated region
    $region46: #{joint_ceeq_loss.1} parent=1 // pred_check
      _
    $region47: #{joint_ceeq_loss.1} parent=1 // pred_check_branch
      %117 = sbr.rel (0) target = $region49
    $region48: #{joint_ceeq_loss.1} parent=1 // pred_region
      %118 = dma.done [#allocation5], 16
    $region49: #{joint_ceeq_loss.1} parent=1 // pred_fallthru
      _
    // Predicated region
    $region50: #{joint_ceeq_loss.1} parent=1 // pred_check
      _
    $region51: #{joint_ceeq_loss.1} parent=1 // pred_check_branch
      %120 = sbr.rel (0) target = $region53
    $region52: #{joint_ceeq_loss.1} parent=1 // pred_region
      %121 = dma.done [#allocation5], 16
    $region53: #{joint_ceeq_loss.1} parent=1 // pred_fallthru
      _
    %122 = vsyncpa [#allocation3], 1
    %123 = vsyncpa [#allocation5], 1

</llo_original>
